<compile_context>
chip_gen: v7x
topology: tpu7x:2x2x1
jax: 0.10.0
libtpu: 0.0.40
codegen_flags: <defaults>
</compile_context>

<pallas_src>
import math
import jax
import jax.numpy as jnp
from jax.experimental import pallas as pl
from jax.experimental.pallas import tpu as pltpu

_LANE = 128


def _vmem_capacity_bytes():
    """Per-core VMEM capacity; conservative 64 MiB (v7x per-TC) if unknown."""
    try:
        return int(pltpu.get_tpu_info().vmem_capacity_bytes)
    except Exception:
        return 64 << 20


def _largest_divisor_leq(n, cap):
    """Largest divisor of n that is <= cap (>= 1)."""
    best = 1
    d = 1
    while d * d <= n:
        if n % d == 0:
            if d <= cap and d > best:
                best = d
            e = n // d
            if e <= cap and e > best:
                best = e
        d += 1
    return best


def _choose_tiles(B, HW_pad, per_sp_io_bytes, per_sp_bias_bytes, w_bytes, vmem_cap):
    """Pick (Bt, nb, TS, n_s) so that double-buffered tiles + resident blocks
    fit in ~half of the per-core VMEM, and the parallel grid has >= 2 blocks
    whenever possible (v7x megacore)."""
    budget = int(0.5 * vmem_cap)
    lanes_total = HW_pad // _LANE

    # bytes per 128-lane spatial column at Bt=1 (2x for double-buffering)
    per_col = _LANE * (2 * per_sp_io_bytes + 2 * per_sp_bias_bytes)
    avail = max(budget - 2 * w_bytes, per_col)
    max_cols = max(1, avail // per_col)
    cols = _largest_divisor_leq(lanes_total, max_cols)
    TS = cols * _LANE

    # If the whole spatial extent fits in one tile, block batches too.
    Bt = 1
    if TS == HW_pad and B > 1:
        per_batch = 2 * TS * per_sp_io_bytes
        rem = max(budget - 2 * w_bytes - 2 * TS * per_sp_bias_bytes, per_batch)
        Bt = int(max(1, min(B, rem // per_batch)))

    n_s = HW_pad // TS
    nb = -(-B // Bt)

    # Megacore (v7x): ensure at least 2 parallel blocks when the problem allows.
    if nb * n_s < 2:
        if B >= 2:
            Bt = -(-B // 2)
            nb = -(-B // Bt)
        elif lanes_total >= 2:
            cols = _largest_divisor_leq(lanes_total, max(1, cols // 2))
            TS = cols * _LANE
            n_s = HW_pad // TS
    return Bt, nb, TS, n_s


def combine(x, y, weight, bias, method="cat", matmul_in_bf16=None):
    """x: (B, C1, H, W), y: (B, C2y, H, W), weight: (C2, C1, 1, 1), bias: (C2,)."""
    B, C1, H, W = x.shape
    By, C2y, Hy, Wy = y.shape
    C2 = weight.shape[0]
    assert (By, Hy, Wy) == (B, H, W)

    if method == "cat":
        c_out = C2 + C2y
    elif method == "sum":
        assert C2y == C2, "sum method requires matching channel counts"
        c_out = C2
    else:
        raise ValueError(f"Method {method} not recognized.")

    HW = H * W
    HW_pad = -(-HW // _LANE) * _LANE           # lane-dense spatial extent
    out_dtype = jnp.promote_types(x.dtype, y.dtype)

    x2 = x.reshape(B, C1, HW)                  # glue reshapes in plain JAX
    y2 = y.reshape(B, C2y, HW)
    if HW_pad != HW:
        pad = HW_pad - HW
        x2 = jnp.pad(x2, ((0, 0), (0, 0), (0, pad)))
        y2 = jnp.pad(y2, ((0, 0), (0, 0), (0, pad)))
    w2 = weight.reshape(C2, C1)

    x_isz = x2.dtype.itemsize
    y_isz = y2.dtype.itemsize
    o_isz = jnp.dtype(out_dtype).itemsize
    per_sp_io = C1 * x_isz + C2y * y_isz + c_out * o_isz   # bytes / (batch, spatial elem)
    per_sp_bias = C2 * 4                                   # bias slab bytes / spatial elem
    w_bytes = C2 * C1 * w2.dtype.itemsize
    vmem_cap = _vmem_capacity_bytes()

    Bt, nb, TS, n_s = _choose_tiles(B, HW_pad, per_sp_io, per_sp_bias, w_bytes, vmem_cap)

    # Resident bias slab (C2, TS): plain VPU add in the kernel, no lane broadcast.
    b_slab = jnp.broadcast_to(bias.astype(jnp.float32).reshape(C2, 1), (C2, TS))

    # bf16 MXU feeds (f32 accumulate) only pay off for large contractions.
    mm_bf16 = (C1 >= 256) if matmul_in_bf16 is None else bool(matmul_in_bf16)

    def kernel(w_ref, b_ref, x_ref, y_ref, out_ref):
        # w_ref: (C2, C1), b_ref: (C2, TS), x_ref: (Bt, C1, TS),
        # y_ref: (Bt, C2y, TS), out_ref: (Bt, c_out, TS)
        w = w_ref[...]
        if mm_bf16:
            w = w.astype(jnp.bfloat16)
        b = b_ref[...]
        for i in range(Bt):                    # static unroll; no batched-dot relayout
            xi = x_ref[i]
            if mm_bf16:
                xi = xi.astype(jnp.bfloat16)
            h = jnp.dot(w, xi, preferred_element_type=jnp.float32) + b
            if method == "cat":
                out_ref[i, :C2, :] = h.astype(out_ref.dtype)
                out_ref[i, C2:, :] = y_ref[i].astype(out_ref.dtype)
            else:
                out_ref[i] = (h + y_ref[i].astype(jnp.float32)).astype(out_ref.dtype)

    # Scoped VMEM sized to the chosen tiles (double-buffered) + headroom.
    needed = 2 * Bt * TS * per_sp_io + 2 * TS * per_sp_bias + 2 * w_bytes
    vmem_limit = int(min(vmem_cap, needed + (16 << 20)))

    out = pl.pallas_call(
        kernel,
        out_shape=jax.ShapeDtypeStruct((B, c_out, HW_pad), out_dtype),
        grid=(nb, n_s),
        in_specs=[
            pl.BlockSpec((C2, C1), lambda b, s: (0, 0)),        # weight: resident
            pl.BlockSpec((C2, TS), lambda b, s: (0, 0)),        # bias slab: resident
            pl.BlockSpec((Bt, C1, TS), lambda b, s: (b, 0, s)),
            pl.BlockSpec((Bt, C2y, TS), lambda b, s: (b, 0, s)),
        ],
        out_specs=pl.BlockSpec((Bt, c_out, TS), lambda b, s: (b, 0, s)),
        compiler_params=pltpu.CompilerParams(
            dimension_semantics=("parallel", "parallel"),
            vmem_limit_bytes=vmem_limit,
        ),
    )(w2, b_slab, x2, y2)

    if HW_pad != HW:
        out = out[:, :, :HW]
    return out.reshape(B, c_out, H, W)


if __name__ == "__main__":
    B, C1, C2, H, W = 2, 4, 8, 16, 16

    key = jax.random.PRNGKey(0)
    kx, ky, kw = jax.random.split(key, 3)

    x = jax.random.normal(kx, (B, C1, H, W), dtype=jnp.float32)
    y = jax.random.normal(ky, (B, C2, H, W), dtype=jnp.float32)

    # conv1x1 DDPM init: variance_scaling(1.0, 'fan_avg', 'uniform'), zero bias.
    fan_in, fan_out = float(C1), float(C2)
    variance = 1.0 / ((fan_in + fan_out) / 2.0)
    bound = math.sqrt(3.0 * variance)
    weight = jax.random.uniform(
        kw, (C2, C1, 1, 1), dtype=jnp.float32, minval=-bound, maxval=bound
    )
    bias = jnp.zeros((C2,), dtype=jnp.float32)

    out_cat = combine(x, y, weight, bias, method="cat")
    out_sum = combine(x, y, weight, bias, method="sum")
    jax.block_until_ready((out_cat, out_sum))

    # Pure-JAX reference
    w2 = weight.reshape(C2, C1)
    h_ref = jnp.einsum("oc,bchw->bohw", w2, x) + bias.reshape(1, C2, 1, 1)
    ref_cat = jnp.concatenate([h_ref, y], axis=1)
    ref_sum = h_ref + y

    assert out_cat.shape == (B, C2 + C2, H, W)
    assert out_sum.shape == (B, C2, H, W)
    assert jnp.allclose(out_cat, ref_cat, atol=1e-5, rtol=1e-5)
    assert jnp.allclose(out_sum, ref_sum, atol=1e-5, rtol=1e-5)

    print("KERNEL_OK")
</pallas_src>

<mosaic_0001>
module attributes {stable_mosaic.version = 11 : i64} {
  func.func @kernel(%arg0: i32, %arg1: i32, %arg2: memref<8x4xf32, #tpu.memory_space<vmem>>, %arg3: memref<8x256xf32, #tpu.memory_space<vmem>>, %arg4: memref<1x4x256xf32, #tpu.memory_space<vmem>>, %arg5: memref<1x8x256xf32, #tpu.memory_space<vmem>>, %arg6: memref<1x16x256xf32, #tpu.memory_space<vmem>>) attributes {dimension_semantics = [#tpu.dimension_semantics<parallel>, #tpu.dimension_semantics<parallel>], iteration_bounds = array<i64: 2, 1>, scalar_prefetch = 0 : i64, scratch_operands = 0 : i64, tpu.core_type = #tpu.core_type<tc>, window_params = [{pipeline_mode = #tpu.pipeline_mode<synchronous>, transform_indices = @transform_0, window_bounds = array<i64: 8, 4>}, {pipeline_mode = #tpu.pipeline_mode<synchronous>, transform_indices = @transform_1, window_bounds = array<i64: 8, 256>}, {transform_indices = @transform_2, window_bounds = array<i64: 1, 4, 256>}, {transform_indices = @transform_3, window_bounds = array<i64: 1, 8, 256>}, {transform_indices = @transform_4, window_bounds = array<i64: 1, 16, 256>}]} {
    %c0 = arith.constant 0 : index
    %c0_0 = arith.constant 0 : index
    %0 = vector.load %arg2[%c0, %c0_0] : memref<8x4xf32, #tpu.memory_space<vmem>>, vector<8x4xf32>
    %c0_1 = arith.constant 0 : index
    %c0_2 = arith.constant 0 : index
    %1 = vector.load %arg3[%c0_1, %c0_2] : memref<8x256xf32, #tpu.memory_space<vmem>>, vector<8x256xf32>
    %c0_3 = arith.constant 0 : index
    %c0_4 = arith.constant 0 : index
    %c0_5 = arith.constant 0 : index
    %2 = vector.load %arg4[%c0_3, %c0_4, %c0_5] : memref<1x4x256xf32, #tpu.memory_space<vmem>>, vector<1x4x256xf32>
    %3 = vector.shape_cast %2 : vector<1x4x256xf32> to vector<4x256xf32>
    %cst = arith.constant dense<0.000000e+00> : vector<8x256xf32>
    %4 = tpu.matmul %0, %3, %cst {dimension_numbers = #tpu.dot_dimension_numbers<[1], [0], [0], [1], [0, 0, 1, 1], [], []>} : vector<8x4xf32>, vector<4x256xf32>, vector<8x256xf32> -> vector<8x256xf32>
    %5 = arith.addf %4, %1 : vector<8x256xf32>
    %c0_6 = arith.constant 0 : index
    %c0_7 = arith.constant 0 : index
    %c0_8 = arith.constant 0 : index
    %6 = vector.load %arg6[%c0_6, %c0_7, %c0_8] : memref<1x16x256xf32, #tpu.memory_space<vmem>>, vector<1x8x256xf32>
    %7 = vector.shape_cast %6 : vector<1x8x256xf32> to vector<8x256xf32>
    %8 = vector.shape_cast %5 : vector<8x256xf32> to vector<1x8x256xf32>
    tpu.vector_store %arg6[%c0_6, %c0_7, %c0_8], %8 {strides = array<i32>} : memref<1x16x256xf32, #tpu.memory_space<vmem>>, vector<1x8x256xf32>,
    %c0_9 = arith.constant 0 : index
    %c0_10 = arith.constant 0 : index
    %c0_11 = arith.constant 0 : index
    %9 = vector.load %arg5[%c0_9, %c0_10, %c0_11] : memref<1x8x256xf32, #tpu.memory_space<vmem>>, vector<1x8x256xf32>
    %10 = vector.shape_cast %9 : vector<1x8x256xf32> to vector<8x256xf32>
    %c0_12 = arith.constant 0 : index
    %c8 = arith.constant 8 : index
    %c0_13 = arith.constant 0 : index
    %11 = vector.load %arg6[%c0_12, %c8, %c0_13] : memref<1x16x256xf32, #tpu.memory_space<vmem>>, vector<1x8x256xf32>
    %12 = vector.shape_cast %11 : vector<1x8x256xf32> to vector<8x256xf32>
    %13 = vector.shape_cast %10 : vector<8x256xf32> to vector<1x8x256xf32>
    tpu.vector_store %arg6[%c0_12, %c8, %c0_13], %13 {strides = array<i32>} : memref<1x16x256xf32, #tpu.memory_space<vmem>>, vector<1x8x256xf32>,
    return
  }
  func.func @transform_0(%arg0: i32, %arg1: i32) -> (i32, i32) {
    %c0_i32 = arith.constant 0 : i32
    %c0_i32_0 = arith.constant 0 : i32
    %c0_i32_1 = arith.constant 0 : i32
    return %c0_i32, %c0_i32_0 : i32, i32
  }
  func.func @transform_1(%arg0: i32, %arg1: i32) -> (i32, i32) {
    %c0_i32 = arith.constant 0 : i32
    %c0_i32_0 = arith.constant 0 : i32
    %c0_i32_1 = arith.constant 0 : i32
    return %c0_i32, %c0_i32_0 : i32, i32
  }
  func.func @transform_2(%arg0: i32, %arg1: i32) -> (i32, i32, i32) {
    %c0_i32 = arith.constant 0 : i32
    %c0_i32_0 = arith.constant 0 : i32
    return %arg0, %c0_i32, %arg1 : i32, i32, i32
  }
  func.func @transform_3(%arg0: i32, %arg1: i32) -> (i32, i32, i32) {
    %c0_i32 = arith.constant 0 : i32
    %c0_i32_0 = arith.constant 0 : i32
    return %arg0, %c0_i32, %arg1 : i32, i32, i32
  }
  func.func @transform_4(%arg0: i32, %arg1: i32) -> (i32, i32, i32) {
    %c0_i32 = arith.constant 0 : i32
    %c0_i32_0 = arith.constant 0 : i32
    return %arg0, %c0_i32, %arg1 : i32, i32, i32
  }
}

</mosaic_0001>

<llo_original>
// kernel: tpu_custom_call.1
$region0: #{tpu_custom_call.1}
  #allocation0 [shape = 'u32[]', space=smem, size = 0x4, offset = 0x4, fixed_abs, tag = 'smem constant byte address 0x4 - core index']
  #allocation1 [shape = 'u32[144,128]{1,0:T(1,128)}', space=vmem, size = 0x12000, scoped, tag = 'internal scratch']
  %s0 = inlined_call_operand.vmem [shape: f32[8,4], index: 0, kind: input, shape index: {}]
  %s1 = inlined_call_operand.hbm [shape: f32[8,256], index: 1, kind: input, shape index: {}]
  %s2 = inlined_call_operand.vmem [shape: f32[2,4,256], index: 2, kind: input, shape index: {}]
  %s3 = inlined_call_operand.hbm [shape: f32[2,8,256], index: 3, kind: input, shape index: {}]
  %s4 = inlined_call_operand.hbm [shape: f32[2,16,256], index: 4, kind: output, shape index: {}]
  %s5 = sld [smem:[#allocation0]]
  $region57: #{tpu_custom_call.1} parent=0
    _
  %s7 = ssub.s32 1, %s5
  %s8 = scalar_select 0, %s7, %s5
  $region1: #{tpu_custom_call.1} parent=0
    #allocation2 [shape = 'u8[8192]{0}', space=vmem, size = 0x2000, scoped, tag = 'input window, operand 1, single buffered']
    #allocation3 [shape = 's32[2]{0}', space=sflag, size = 0x8, scoped, tag = 'scoped memory for tpu_custom_call.1']
    #allocation4 [shape = 's32[2]{0}', space=sflag, size = 0x8, scoped, tag = 'scoped memory for tpu_custom_call.1']
    #allocation5 [shape = 'u8[16384]{0}', space=vmem, size = 0x4000, scoped, tag = 'input window, operand 3']
    #allocation6 [shape = 's32[2]{0}', space=sflag, size = 0x8, scoped, tag = 'scoped memory for tpu_custom_call.1']
    #allocation7 [shape = 'u8[32768]{0}', space=vmem, size = 0x8000, scoped, tag = 'output window, operand 0']
    %9 = vsyncpa [#allocation3], 0
    %10 = vsyncpa [#allocation6], 0
    %s11 = scalar_lea.sflag [#allocation6], 1
    %12 = vsyncpa %s11, 0
    %13 = vsyncpa [#allocation4], 0
    %s14 = scalar_lea.sflag [#allocation4], 1
    %15 = vsyncpa %s14, 0
    loop: start=0, step=1, limit=4
    $region2: #{tpu_custom_call.1} parent=1 // loop_pre_header
      _
    $region3: #{tpu_custom_call.1} parent=1 // loop_header
      %s17 = sphi 0, %s21
      %p18 = scmp.ge.s32.totalorder %s17, 4
      %s24 = sphi 0, %s36
      %s25 = sphi 0, %s32
      %s26 = sphi 0, %s24
      %s27 = sphi 0, %s25
      %s28 = sphi 0, %s26
      %s29 = sphi 0, %s27
      %s37 = sphi 0, %s37
      %s39 = sphi 0, %s37
      %s40 = sphi 0, %s39
      %s54 = sphi 0, %s40
      %s58 = sphi 0, %s58
      %s60 = sphi 0, %s58
      %s61 = sphi 0, %s60
      %s75 = sphi 0, %s61
      %s83 = sphi 0, %s85
      %s86 = sphi 0, %s83
      %s87 = sphi 0, %s86
      %s103 = sphi 0, %s87
      %s111 = sphi 0, %s113
      %s114 = sphi 0, %s111
      %s115 = sphi 0, %s114
      %s131 = sphi 0, %s115
      %s139 = sphi 0, %s141
      %s142 = sphi 0, %s139
      %s143 = sphi 0, %s142
      %s159 = sphi 0, %s143
    $region4: #{tpu_custom_call.1} parent=1 // loop_header_branch
      %20 = sbr.rel (%p18) target = $region8
    $region5: #{tpu_custom_call.1} parent=1 // loop_body
      %s22 = ssub.s32 %s17, 1
      %s23 = ssub.s32 %s17, 2
      %s30 = sadd.s32 1, %s25
      %p31 = scmp.ge.s32.totalorder %s30, 1
      %s32 = scalar_select %p31, 0, %s30
      %s33 = sadd.s32 1, %s24
      %s34 = scalar_select %p31, %s33, %s24
      %p35 = scmp.ge.s32.totalorder %s34, 2
      %s36 = scalar_select %p35, 0, %s34
      %s38 = sadd.s32 %s37, 1
      %p41 = scmp.eq.s32.totalorder %s17, 1
      %p42 = scmp.ne.s32.totalorder %s37, %s39
      %p43 = scmp.eq.s32.totalorder %s17, 0
      %p44 = por %p42, %p43
      %p45 = scmp.ne.s32.totalorder %s37, %s39
      %p46 = scmp.eq.s32.totalorder %s22, 1
      %p47 = por %p45, %p46
      %p48 = scmp.ne.s32.totalorder %s39, %s40
      %p49 = scmp.eq.s32.totalorder %s22, 0
      %p50 = por %p48, %p49
      %p51 = scmp.ne.s32.totalorder %s39, %s40
      %p52 = scmp.eq.s32.totalorder %s23, 1
      %p53 = por %p51, %p52
      %p55 = scmp.ne.s32.totalorder %s40, %s54
      %p56 = scmp.eq.s32.totalorder %s23, 0
      %p57 = por %p55, %p56
      %s59 = sadd.s32 %s58, 1
      %p62 = scmp.eq.s32.totalorder %s17, 1
      %p63 = scmp.ne.s32.totalorder %s58, %s60
      %p64 = scmp.eq.s32.totalorder %s17, 0
      %p65 = por %p63, %p64
      %p66 = scmp.ne.s32.totalorder %s58, %s60
      %p67 = scmp.eq.s32.totalorder %s22, 1
      %p68 = por %p66, %p67
      %p69 = scmp.ne.s32.totalorder %s60, %s61
      %p70 = scmp.eq.s32.totalorder %s22, 0
      %p71 = por %p69, %p70
      %p72 = scmp.ne.s32.totalorder %s60, %s61
      %p73 = scmp.eq.s32.totalorder %s23, 1
      %p74 = por %p72, %p73
      %p76 = scmp.ne.s32.totalorder %s61, %s75
      %p77 = scmp.eq.s32.totalorder %s23, 0
      %p78 = por %p76, %p77
      %s79 = ssub.s32 %s24, %s36
      %s80 = ssub.s32 %s25, %s32
      %s81 = sor.u32 %s79, %s80
      %p82 = scmp.eq.s32.totalorder %s81, 0
      %s84 = sadd.s32 %s83, 1
      %s85 = scalar_select %p82, %s83, %s84
      %p88 = pneg %p82
      %p89 = scmp.eq.s32.totalorder %s17, 1
      %p90 = por %p88, %p89
      %p91 = scmp.ne.s32.totalorder %s83, %s86
      %p92 = scmp.eq.s32.totalorder %s17, 0
      %p93 = por %p91, %p92
      %p94 = scmp.ne.s32.totalorder %s83, %s86
      %p95 = scmp.eq.s32.totalorder %s22, 1
      %p96 = por %p94, %p95
      %p97 = scmp.ne.s32.totalorder %s86, %s87
      %p98 = scmp.eq.s32.totalorder %s22, 0
      %p99 = por %p97, %p98
      %p100 = scmp.ne.s32.totalorder %s86, %s87
      %p101 = scmp.eq.s32.totalorder %s23, 1
      %p102 = por %p100, %p101
      %p104 = scmp.ne.s32.totalorder %s87, %s103
      %p105 = scmp.eq.s32.totalorder %s23, 0
      %p106 = por %p104, %p105
      %s107 = ssub.s32 %s24, %s36
      %s108 = ssub.s32 %s25, %s32
      %s109 = sor.u32 %s107, %s108
      %p110 = scmp.eq.s32.totalorder %s109, 0
      %s112 = sadd.s32 %s111, 1
      %s113 = scalar_select %p110, %s111, %s112
      %p116 = pneg %p110
      %p117 = scmp.eq.s32.totalorder %s17, 1
      %p118 = por %p116, %p117
      %p119 = scmp.ne.s32.totalorder %s111, %s114
      %p120 = scmp.eq.s32.totalorder %s17, 0
      %p121 = por %p119, %p120
      %p122 = scmp.ne.s32.totalorder %s111, %s114
      %p123 = scmp.eq.s32.totalorder %s22, 1
      %p124 = por %p122, %p123
      %p125 = scmp.ne.s32.totalorder %s114, %s115
      %p126 = scmp.eq.s32.totalorder %s22, 0
      %p127 = por %p125, %p126
      %p128 = scmp.ne.s32.totalorder %s114, %s115
      %p129 = scmp.eq.s32.totalorder %s23, 1
      %p130 = por %p128, %p129
      %p132 = scmp.ne.s32.totalorder %s115, %s131
      %p133 = scmp.eq.s32.totalorder %s23, 0
      %p134 = por %p132, %p133
      %s135 = ssub.s32 %s24, %s36
      %s136 = ssub.s32 %s25, %s32
      %s137 = sor.u32 %s135, %s136
      %p138 = scmp.eq.s32.totalorder %s137, 0
      %s140 = sadd.s32 %s139, 1
      %s141 = scalar_select %p138, %s139, %s140
      %p144 = pneg %p138
      %p145 = scmp.eq.s32.totalorder %s17, 1
      %p146 = por %p144, %p145
      %p147 = scmp.ne.s32.totalorder %s139, %s142
      %p148 = scmp.eq.s32.totalorder %s17, 0
      %p149 = por %p147, %p148
      %p150 = scmp.ne.s32.totalorder %s139, %s142
      %p151 = scmp.eq.s32.totalorder %s22, 1
      %p152 = por %p150, %p151
      %p153 = scmp.ne.s32.totalorder %s142, %s143
      %p154 = scmp.eq.s32.totalorder %s22, 0
      %p155 = por %p153, %p154
      %p156 = scmp.ne.s32.totalorder %s142, %s143
      %p157 = scmp.eq.s32.totalorder %s23, 1
      %p158 = por %p156, %p157
      %p160 = scmp.ne.s32.totalorder %s143, %s159
      %p161 = scmp.eq.s32.totalorder %s23, 0
      %p162 = por %p160, %p161
      %p163 = scmp.le.s32.totalorder 1, %s17
      %p164 = scmp.lt.s32.totalorder %s17, 3
      %p165 = pnand %p163, %p164
      %p166 = pneg %p165
      // Predicated region
      $region9: #{tpu_custom_call.1} parent=5 // pred_check
        _
      $region10: #{tpu_custom_call.1} parent=5 // pred_check_branch
        %168 = sbr.rel (%p165) target = $region12
      $region11: #{tpu_custom_call.1} parent=5 // pred_region
        %s169 = ssub.s32 %s17, 1
        // Predicated region
        $region13: #{tpu_custom_call.1} parent=11 // pred_check
          %p170 = pneg %p50
        $region14: #{tpu_custom_call.1} parent=11 // pred_check_branch
          %172 = sbr.rel (%p170) target = $region16
        $region15: #{tpu_custom_call.1} parent=11 // pred_region
          _
        $region16: #{tpu_custom_call.1} parent=11 // pred_fallthru
          _
        // Predicated region
        $region17: #{tpu_custom_call.1} parent=11 // pred_check
          %p173 = pneg %p71
        $region18: #{tpu_custom_call.1} parent=11 // pred_check_branch
          %175 = sbr.rel (%p173) target = $region20
        $region19: #{tpu_custom_call.1} parent=11 // pred_region
          %s177 = ssub.s32 256, 256
          %178 = vsyncadd [#allocation3], %s177
          %s180 = sshll.u32 [#allocation2], 4
          %s181 = int_to_ptr.vmem [resolvable:$true] %s180
          %183 = dma.hbm_to_vmem [thread:$0]  %s1, 256, %s181, [#allocation3]
        $region20: #{tpu_custom_call.1} parent=11 // pred_fallthru
          _
      $region12: #{tpu_custom_call.1} parent=5 // pred_fallthru
        _
      %p184 = scmp.lt.s32.totalorder %s17, 2
      // Predicated region
      $region21: #{tpu_custom_call.1} parent=5 // pred_check
        %p185 = pneg %p184
      $region22: #{tpu_custom_call.1} parent=5 // pred_check_branch
        %187 = sbr.rel (%p185) target = $region24
      $region23: #{tpu_custom_call.1} parent=5 // pred_region
        // Predicated region
        $region25: #{tpu_custom_call.1} parent=23 // pred_check
          %p188 = pneg %p93
        $region26: #{tpu_custom_call.1} parent=23 // pred_check_branch
          %190 = sbr.rel (%p188) target = $region28
        $region27: #{tpu_custom_call.1} parent=23 // pred_region
          %s191 = smul.u32 2, %s25
          %p192 = scmp.lt.s32.totalorder %s24, 1
          %s193 = scalar_select %p192, %s24, 1
          %p194 = scmp.lt.s32.totalorder %s191, 1
          %s195 = scalar_select %p194, %s191, 1
          %s196 = smul.addr %s193, 2
          %s197 = sadd.s32 %s195, %s196
          %s198 = smul.addr %s197, 4
          %s199 = scalar_lea.vmem %s2, %s198
          %s200 = smul.u32 2, %s25
        $region28: #{tpu_custom_call.1} parent=23 // pred_fallthru
          _
        // Predicated region
        $region29: #{tpu_custom_call.1} parent=23 // pred_check
          %p201 = pneg %p121
        $region30: #{tpu_custom_call.1} parent=23 // pred_check_branch
          %203 = sbr.rel (%p201) target = $region32
        $region31: #{tpu_custom_call.1} parent=23 // pred_region
          %s204 = sand.u32 %s111, 1
          %s205 = scalar_lea.sflag [#allocation6], %s204
          %s206 = sand.u32 %s111, 1
          %s207 = smul.addr %s206, 16
          %s208 = scalar_lea.vmem [#allocation5], %s207
          %s209 = smul.u32 2, %s25
          %s211 = ssub.s32 256, 256
          %212 = vsyncadd %s205, %s211
          %s213 = smul.addr %s24, 2
          %s214 = sadd.s32 %s209, %s213
          %s215 = smul.addr %s214, 128
          %s216 = scalar_lea.hbm %s3, %s215
          %s218 = sshll.u32 %s208, 4
          %s219 = int_to_ptr.vmem [resolvable:$true] %s218
          %221 = dma.hbm_to_vmem [thread:$0]  %s216, 256, %s219, %s205
        $region32: #{tpu_custom_call.1} parent=23 // pred_fallthru
          _
      $region24: #{tpu_custom_call.1} parent=5 // pred_fallthru
        _
      %p222 = scmp.le.s32.totalorder 1, %s17
      %p223 = scmp.lt.s32.totalorder %s17, 3
      %p224 = pnand %p222, %p223
      %p225 = pneg %p224
      // Predicated region
      $region33: #{tpu_custom_call.1} parent=5 // pred_check
        _
      $region34: #{tpu_custom_call.1} parent=5 // pred_check_branch
        %227 = sbr.rel (%p224) target = $region36
      $region35: #{tpu_custom_call.1} parent=5 // pred_region
        %s228 = ssub.s32 %s17, 1
        // Predicated region
        $region37: #{tpu_custom_call.1} parent=35 // pred_check
          %p229 = pneg %p71
        $region38: #{tpu_custom_call.1} parent=35 // pred_check_branch
          %231 = sbr.rel (%p229) target = $region40
        $region39: #{tpu_custom_call.1} parent=35 // pred_region
          %232 = dma.done [#allocation3], 256
        $region40: #{tpu_custom_call.1} parent=35 // pred_fallthru
          _
        %s233 = sand.u32 %s114, 1
        %s234 = scalar_lea.sflag [#allocation6], %s233
        %s235 = sand.u32 %s114, 1
        %s236 = smul.addr %s235, 16
        %s237 = scalar_lea.vmem [#allocation5], %s236
        // Predicated region
        $region41: #{tpu_custom_call.1} parent=35 // pred_check
          %p238 = pneg %p127
        $region42: #{tpu_custom_call.1} parent=35 // pred_check_branch
          %240 = sbr.rel (%p238) target = $region44
        $region43: #{tpu_custom_call.1} parent=35 // pred_region
          %241 = dma.done %s234, 256
        $region44: #{tpu_custom_call.1} parent=35 // pred_fallthru
          _
        %p242 = pneg %p50
        %p243 = pneg %p47
        %p244 = pneg %p71
        %p245 = pneg %p68
        %s246 = smul.u32 2, %s27
        %p247 = scmp.lt.s32.totalorder %s26, 1
        %s248 = scalar_select %p247, %s26, 1
        %p249 = scmp.lt.s32.totalorder %s246, 1
        %s250 = scalar_select %p249, %s246, 1
        %s251 = smul.addr %s248, 2
        %s252 = sadd.s32 %s250, %s251
        %s253 = smul.addr %s252, 4
        %s254 = scalar_lea.vmem %s2, %s253
        %p255 = pneg %p99
        %p256 = pneg %p96
        %s257 = sand.u32 %s114, 1
        %s258 = scalar_lea.sflag [#allocation6], %s257
        %s259 = sand.u32 %s114, 1
        %s260 = smul.addr %s259, 16
        %s261 = scalar_lea.vmem [#allocation5], %s260
        %p262 = pneg %p127
        %p263 = pneg %p124
        %p264 = pneg %p155
        %p265 = pneg %p152
        %s266 = sand.u32 %s142, 1
        %s267 = scalar_lea.sflag [#allocation4], %s266
        %s268 = sand.u32 %s142, 1
        %s269 = smul.addr %s268, 32
        %s270 = scalar_lea.vmem [#allocation7], %s269
        %s271 = smul.u32 2, %s27
        %p272 = scmp.lt.s32.totalorder %s26, 1
        %s273 = scalar_select %p272, %s26, 1
        %p274 = scmp.lt.s32.totalorder %s271, 1
        %s275 = scalar_select %p274, %s271, 1
        %s276 = smul.addr %s273, 2
        %s277 = sadd.s32 %s275, %s276
        %s278 = smul.addr %s277, 4
        %s279 = scalar_lea.vmem %s2, %s278
        %s280 = smul.u32 2, %s27
        %s281 = smul.u32 2, %s27
        %s282 = smul.u32 2, %s27
        %v283 = vld [vmem:[%s0] sm:$0xff]
        %v284 = vld [vmem:[#allocation2] sm:$0xff]
        %v285 = vld [vmem:[#allocation2 + $0x8] sm:$0xff]
        %v286 = vld [vmem:[%s279] sm:$0xff]
        %v288 = vcombine.high %v286, %v286
        %vm289 = vcmask 31744
        %v291 = vsel %vm289, %v283, 0
        %vm293 = vcmask 1043456
        %v294 = vsel %vm293, %v286, 0
        %v296 = vsel %vm293, %v288, 0
        %298 = vmatprep.subr.mxu0 %v296
        %299 = vmatpush1.msra.mxu0 %v294
        %300 = vmatprep.subr.mxu0 0.0
        %301 = vmatpush1.msra.mxu0 0.0
        %302 = vmatprep.subr.mxu0 0.0
        %303 = vmatpush1.msra.mxu0 0.0
        %304 = vmatprep.subr.mxu0 0.0
        %305 = vmatpush1.msra.mxu0 0.0
        %306 = vmatprep.subr.mxu0 0.0
        %307 = vmatpush1.msra.mxu0 0.0
        %308 = vmatprep.subr.mxu0 0.0
        %309 = vmatpush1.msra.mxu0 0.0
        %310 = vmatprep.subr.mxu0 0.0
        %311 = vmatpush1.msra.mxu0 0.0
        %312 = vmatprep.subr.mxu0 0.0
        %313 = vmatpush1.msra.mxu0 0.0
        %314 = vmatprep.subr.mxu0 0.0
        %315 = vmatpush1.msra.mxu0 0.0
        %316 = vmatprep.subr.mxu0 0.0
        %317 = vmatpush1.msra.mxu0 0.0
        %318 = vmatprep.subr.mxu0 0.0
        %319 = vmatpush1.msra.mxu0 0.0
        %320 = vmatprep.subr.mxu0 0.0
        %321 = vmatpush1.msra.mxu0 0.0
        %322 = vmatprep.subr.mxu0 0.0
        %323 = vmatpush1.msra.mxu0 0.0
        %324 = vmatprep.subr.mxu0 0.0
        %325 = vmatpush1.msra.mxu0 0.0
        %326 = vmatprep.subr.mxu0 0.0
        %327 = vmatpush1.msra.mxu0 0.0
        %328 = vmatprep.subr.mxu0 0.0
        %329 = vmatpush1.msra.mxu0 0.0
        %330 = vmatprep.subr.mxu0 0.0
        %331 = vmatpush1.msra.mxu0 0.0
        %332 = vmatprep.subr.mxu0 0.0
        %333 = vmatpush1.msra.mxu0 0.0
        %334 = vmatprep.subr.mxu0 0.0
        %335 = vmatpush1.msra.mxu0 0.0
        %336 = vmatprep.subr.mxu0 0.0
        %337 = vmatpush1.msra.mxu0 0.0
        %338 = vmatprep.subr.mxu0 0.0
        %339 = vmatpush1.msra.mxu0 0.0
        %340 = vmatprep.subr.mxu0 0.0
        %341 = vmatpush1.msra.mxu0 0.0
        %342 = vmatprep.subr.mxu0 0.0
        %343 = vmatpush1.msra.mxu0 0.0
        %344 = vmatprep.subr.mxu0 0.0
        %345 = vmatpush1.msra.mxu0 0.0
        %346 = vmatprep.subr.mxu0 0.0
        %347 = vmatpush1.msra.mxu0 0.0
        %348 = vmatprep.subr.mxu0 0.0
        %349 = vmatpush1.msra.mxu0 0.0
        %350 = vmatprep.subr.mxu0 0.0
        %351 = vmatpush1.msra.mxu0 0.0
        %352 = vmatprep.subr.mxu0 0.0
        %353 = vmatpush1.msra.mxu0 0.0
        %354 = vmatprep.subr.mxu0 0.0
        %355 = vmatpush1.msra.mxu0 0.0
        %356 = vmatprep.subr.mxu0 0.0
        %357 = vmatpush1.msra.mxu0 0.0
        %358 = vmatprep.subr.mxu0 0.0
        %359 = vmatpush1.msra.mxu0 0.0
        %360 = vmatprep.subr.mxu0 0.0
        %361 = vmatpush1.msra.mxu0 0.0
        %362 = vmatprep.mubr.f32.mxu0 0.0
        %363 = vmatmul.mubr.f32.gmra.mrb[0].mxu0 %v291
        %v364 = vpop.f32.mrb[0].mxu0
        %v365 = vadd.f32 %v284, %v364
        %v366 = vpop.f32.mrb[0].mxu0
        %v367 = vadd.f32 %v285, %v366
        %368 = vdwg.mxu0
        %369 = vst [vmem:[%s270] sm:$0xff] %v365
        %370 = vst [vmem:[%s270 + $0x8] sm:$0xff] %v367
        %v371 = vld [vmem:[%s237] sm:$0xff]
        %v372 = vld [vmem:[%s237 + $0x8] sm:$0xff]
        %373 = vst [vmem:[%s270 + $0x10] sm:$0xff] %v371
        %374 = vst [vmem:[%s270 + $0x18] sm:$0xff] %v372
        %s375 = sand.u32 %s142, 1
        %s376 = scalar_lea.sflag [#allocation4], %s375
        %s377 = sand.u32 %s142, 1
        %s378 = smul.addr %s377, 32
        %s379 = scalar_lea.vmem [#allocation7], %s378
        // Predicated region
        $region45: #{tpu_custom_call.1} parent=35 // pred_check
          %p380 = pneg %p152
        $region46: #{tpu_custom_call.1} parent=35 // pred_check_branch
          %382 = sbr.rel (%p380) target = $region48
        $region47: #{tpu_custom_call.1} parent=35 // pred_region
          %s383 = smul.u32 2, %s27
          %s385 = ssub.s32 512, 512
          %386 = vsyncadd %s376, %s385
          %s387 = smul.addr %s26, 4
          %s388 = sadd.s32 %s383, %s387
          %s389 = smul.addr %s388, 128
          %s390 = scalar_lea.hbm %s4, %s389
          %s391 = sshll.u32 %s379, 4
          %s392 = int_to_ptr.vmem [resolvable:$true] %s391
          %397 = dma.vmem_to_hbm [thread:$0]  %s392, 512, %s390, %s376, 256, 256, 16
        $region48: #{tpu_custom_call.1} parent=35 // pred_fallthru
          _
      $region36: #{tpu_custom_call.1} parent=5 // pred_fallthru
        _
      %p398 = scmp.le.s32.totalorder 2, %s17
      // Predicated region
      $region49: #{tpu_custom_call.1} parent=5 // pred_check
        %p399 = pneg %p398
      $region50: #{tpu_custom_call.1} parent=5 // pred_check_branch
        %401 = sbr.rel (%p399) target = $region52
      $region51: #{tpu_custom_call.1} parent=5 // pred_region
        %s402 = ssub.s32 %s17, 2
        // Predicated region
        $region53: #{tpu_custom_call.1} parent=51 // pred_check
          %p403 = pneg %p158
        $region54: #{tpu_custom_call.1} parent=51 // pred_check_branch
          %405 = sbr.rel (%p403) target = $region56
        $region55: #{tpu_custom_call.1} parent=51 // pred_region
          %s406 = sand.u32 %s143, 1
          %s407 = scalar_lea.sflag [#allocation4], %s406
          %s408 = sand.u32 %s143, 1
          %s409 = smul.addr %s408, 32
          %s410 = scalar_lea.vmem [#allocation7], %s409
          %411 = dma.done %s407, 512
        $region56: #{tpu_custom_call.1} parent=51 // pred_fallthru
          _
      $region52: #{tpu_custom_call.1} parent=5 // pred_fallthru
        _
    $region6: #{tpu_custom_call.1} parent=1 // loop_footer
      %s21 = sadd.s32 1, %s17
    $region7: #{tpu_custom_call.1} parent=1 // loop_footer_branch
      %16 = sbr.rel target = $region3
    $region8: #{tpu_custom_call.1} parent=1 // loop_exit
      _
    %412 = vsyncpa [#allocation3], 1
    %s413 = scalar_lea.sflag [#allocation3], 1
    %414 = vsyncpa %s413, 1
    %415 = vsyncpa [#allocation6], 1
    %s416 = scalar_lea.sflag [#allocation6], 1
    %417 = vsyncpa %s416, 1
    %418 = vsyncpa [#allocation4], 1
    %s419 = scalar_lea.sflag [#allocation4], 1
    %420 = vsyncpa %s419, 1

</llo_original>
